<compile_context>
chip_gen: v7x
topology: tpu7x:2x2x1
jax: 0.10.0
libtpu: 0.0.40
codegen_flags: <defaults>
</compile_context>

<pallas_src>
import functools

import jax
import jax.numpy as jnp
from jax.experimental import pallas as pl
from jax.experimental.pallas import tpu as pltpu


def vision_kernel(x_ref, w1_ref, b1_ref, w2_ref, b2_ref, o_ref):
    # Layer 1 GEMM on the MXU: f32 inputs, f32 accumulation.
    h = jnp.dot(x_ref[...], w1_ref[...], preferred_element_type=jnp.float32)
    # Epilogue: bias add (VPU) + tanh (EUP transcendental).
    h = jnp.tanh(h + b1_ref[...])
    # Layer 2 (tiny, lane-padded head) GEMM, f32 accumulation.
    o = jnp.dot(h, w2_ref[...], preferred_element_type=jnp.float32)
    # Lane-dense (tm, 128) store; real H columns are sliced out in the wrapper.
    o_ref[...] = (o + b2_ref[...]).astype(o_ref.dtype)


def prepare_params(w1, b1, w2, b2):
    """One-time weight prep (do NOT call per forward step).

    w1: (E, C), w2: (C, H) stored as (in, out) — transposed from PyTorch's
    (out, in) layout — so the kernel computes x @ W + b directly.  The H=12 head
    is zero-padded to a full 128-lane multiple for unmasked lane-dense stores.
    """
    C = w1.shape[1]
    H = w2.shape[1]
    Hp = 128 * pl.cdiv(H, 128)
    w1p = w1.astype(jnp.float32)
    b1p = b1.reshape(1, C).astype(jnp.float32)
    w2p = jnp.zeros((C, Hp), jnp.float32).at[:, :H].set(w2.astype(jnp.float32))
    b2p = jnp.zeros((1, Hp), jnp.float32).at[:, :H].set(b2.astype(jnp.float32))
    return w1p, b1p, w2p, b2p


def _batch_tile(batch, block_m):
    """Multiple-of-8 batch tile, <= block_m, keeping >= 2 grid steps when possible
    so the "parallel" batch axis can shard across both v7x TensorCores."""
    if batch <= 8:
        return 8
    half = 8 * pl.cdiv(pl.cdiv(batch, 2), 8)  # ~half the batch, rounded up to 8 rows
    return max(8, min(block_m, half))


@functools.partial(jax.jit, static_argnames=("hidden_size", "block_m", "out_dtype"))
def vision_forward(x, w1p, b1p, w2p, b2p, *, hidden_size, block_m=1024,
                   out_dtype=jnp.float32):
    """x: (B, E) f32; params from prepare_params. Returns (B, hidden_size)."""
    B, E = x.shape
    C = w1p.shape[1]
    Hp = w2p.shape[1]

    tm = _batch_tile(B, block_m)
    grid = (pl.cdiv(B, tm),)

    flops = 2 * B * (E * C + C * Hp)
    bytes_accessed = (x.size * x.dtype.itemsize
                      + (w1p.size + b1p.size + w2p.size + b2p.size) * 4
                      + B * Hp * jnp.dtype(out_dtype).itemsize)

    out = pl.pallas_call(
        vision_kernel,
        out_shape=jax.ShapeDtypeStruct((B, Hp), out_dtype),
        grid_spec=pltpu.PrefetchScalarGridSpec(
            num_scalar_prefetch=0,
            grid=grid,
            in_specs=[
                # x tile: pipelined/double-buffered; ragged last tile handled by
                # Pallas's masked edge-block reads (garbage rows never mix with
                # valid rows and their output rows are masked on writeback).
                pl.BlockSpec((tm, E), lambda i: (i, 0)),
                pl.BlockSpec((E, C), lambda i: (0, 0)),    # w1 resident in VMEM
                pl.BlockSpec((1, C), lambda i: (0, 0)),    # b1 resident
                pl.BlockSpec((C, Hp), lambda i: (0, 0)),   # w2 resident (lane-padded)
                pl.BlockSpec((1, Hp), lambda i: (0, 0)),   # b2 resident (lane-padded)
            ],
            out_specs=pl.BlockSpec((tm, Hp), lambda i: (i, 0)),
        ),
        compiler_params=pltpu.CompilerParams(
            dimension_semantics=("parallel",),
        ),
        cost_estimate=pl.CostEstimate(
            flops=flops,
            transcendentals=B * C,
            bytes_accessed=bytes_accessed,
        ),
    )(x, w1p, b1p, w2p, b2p)

    return out[:, :hidden_size]


def init_params(key, encoding_size, compression_size, hidden_size):
    """Deterministic init mimicking nn.Linear's U(-1/sqrt(fan_in), 1/sqrt(fan_in))."""
    k1, k2, k3, k4 = jax.random.split(key, 4)
    bound1 = 1.0 / jnp.sqrt(encoding_size)
    bound2 = 1.0 / jnp.sqrt(compression_size)
    # stored as (in, out): transpose of PyTorch's weight layout
    w1 = jax.random.uniform(k1, (encoding_size, compression_size),
                            jnp.float32, -bound1, bound1)
    b1 = jax.random.uniform(k2, (compression_size,), jnp.float32, -bound1, bound1)
    w2 = jax.random.uniform(k3, (compression_size, hidden_size),
                            jnp.float32, -bound2, bound2)
    b2 = jax.random.uniform(k4, (hidden_size,), jnp.float32, -bound2, bound2)
    return w1, b1, w2, b2


if __name__ == "__main__":
    encoding_size = 1024    # module defaults
    compression_size = 64
    hidden_size = 12
    batch = 16              # small batch -> tm=8, 2 pipelined grid steps

    key = jax.random.PRNGKey(0)
    kx, kp = jax.random.split(key)
    x = jax.random.normal(kx, (batch, encoding_size), jnp.float32)
    w1, b1, w2, b2 = init_params(kp, encoding_size, compression_size, hidden_size)

    # Weight prep (bias reshape + lane-padding of the H=12 head) done ONCE here.
    w1p, b1p, w2p, b2p = prepare_params(w1, b1, w2, b2)

    out = vision_forward(x, w1p, b1p, w2p, b2p, hidden_size=hidden_size)
    out = jax.block_until_ready(out)

    # Pure-f32 reference of the PyTorch semantics.
    ref = jnp.tanh(x @ w1 + b1) @ w2 + b2
    assert out.shape == (batch, hidden_size)
    assert jnp.allclose(out, ref, atol=2e-2, rtol=2e-2), \
        float(jnp.max(jnp.abs(out - ref)))

    # Ragged batch (not a multiple of the tile): exercises Pallas's masked handling
    # of the last partial block — no wrapper-side jnp.pad of x is needed.
    b_ragged = 12
    out_r = vision_forward(x[:b_ragged], w1p, b1p, w2p, b2p,
                           hidden_size=hidden_size)
    out_r = jax.block_until_ready(out_r)
    assert out_r.shape == (b_ragged, hidden_size)
    assert jnp.allclose(out_r, ref[:b_ragged], atol=2e-2, rtol=2e-2)

    print("KERNEL_OK")
</pallas_src>

<mosaic_0001>
module attributes {stable_mosaic.version = 11 : i64} {
  func.func @vision_kernel(%arg0: i32, %arg1: memref<8x1024xf32, #tpu.memory_space<vmem>>, %arg2: memref<1024x64xf32, #tpu.memory_space<vmem>>, %arg3: memref<1x64xf32, #tpu.memory_space<vmem>>, %arg4: memref<64x128xf32, #tpu.memory_space<vmem>>, %arg5: memref<1x128xf32, #tpu.memory_space<vmem>>, %arg6: memref<8x128xf32, #tpu.memory_space<vmem>>) attributes {dimension_semantics = [#tpu.dimension_semantics<parallel>], iteration_bounds = array<i64: 2>, scalar_prefetch = 0 : i64, scratch_operands = 0 : i64, tpu.core_type = #tpu.core_type<tc>, window_params = [{transform_indices = @transform_0, window_bounds = array<i64: 8, 1024>}, {pipeline_mode = #tpu.pipeline_mode<synchronous>, transform_indices = @transform_1, window_bounds = array<i64: 1024, 64>}, {pipeline_mode = #tpu.pipeline_mode<synchronous>, transform_indices = @transform_2, window_bounds = array<i64: 1, 64>}, {pipeline_mode = #tpu.pipeline_mode<synchronous>, transform_indices = @transform_3, window_bounds = array<i64: 64, 128>}, {pipeline_mode = #tpu.pipeline_mode<synchronous>, transform_indices = @transform_4, window_bounds = array<i64: 1, 128>}, {transform_indices = @transform_5, window_bounds = array<i64: 8, 128>}]} {
    %c0 = arith.constant 0 : index
    %c0_0 = arith.constant 0 : index
    %0 = vector.load %arg1[%c0, %c0_0] : memref<8x1024xf32, #tpu.memory_space<vmem>>, vector<8x1024xf32>
    %c0_1 = arith.constant 0 : index
    %c0_2 = arith.constant 0 : index
    %1 = vector.load %arg2[%c0_1, %c0_2] : memref<1024x64xf32, #tpu.memory_space<vmem>>, vector<1024x64xf32>
    %cst = arith.constant dense<0.000000e+00> : vector<8x64xf32>
    %2 = tpu.matmul %0, %1, %cst {dimension_numbers = #tpu.dot_dimension_numbers<[1], [0], [0], [1], [0, 0, 1, 1], [], []>} : vector<8x1024xf32>, vector<1024x64xf32>, vector<8x64xf32> -> vector<8x64xf32>
    %c0_3 = arith.constant 0 : index
    %c0_4 = arith.constant 0 : index
    %3 = vector.load %arg3[%c0_3, %c0_4] : memref<1x64xf32, #tpu.memory_space<vmem>>, vector<1x64xf32>
    %4 = vector.broadcast %3 : vector<1x64xf32> to vector<8x64xf32>
    %5 = arith.addf %2, %4 : vector<8x64xf32>
    %6 = math.tanh %5 : vector<8x64xf32>
    %c0_5 = arith.constant 0 : index
    %c0_6 = arith.constant 0 : index
    %7 = vector.load %arg4[%c0_5, %c0_6] : memref<64x128xf32, #tpu.memory_space<vmem>>, vector<64x128xf32>
    %cst_7 = arith.constant dense<0.000000e+00> : vector<8x128xf32>
    %8 = tpu.matmul %6, %7, %cst_7 {dimension_numbers = #tpu.dot_dimension_numbers<[1], [0], [0], [1], [0, 0, 1, 1], [], []>} : vector<8x64xf32>, vector<64x128xf32>, vector<8x128xf32> -> vector<8x128xf32>
    %c0_8 = arith.constant 0 : index
    %c0_9 = arith.constant 0 : index
    %9 = vector.load %arg5[%c0_8, %c0_9] : memref<1x128xf32, #tpu.memory_space<vmem>>, vector<1x128xf32>
    %10 = vector.broadcast %9 : vector<1x128xf32> to vector<8x128xf32>
    %11 = arith.addf %8, %10 : vector<8x128xf32>
    %c0_10 = arith.constant 0 : index
    %c0_11 = arith.constant 0 : index
    %12 = vector.load %arg6[%c0_10, %c0_11] : memref<8x128xf32, #tpu.memory_space<vmem>>, vector<8x128xf32>
    tpu.vector_store %arg6[%c0_10, %c0_11], %11 {strides = array<i32>} : memref<8x128xf32, #tpu.memory_space<vmem>>, vector<8x128xf32>,
    return
  }
  func.func @transform_0(%arg0: i32) -> (i32, i32) {
    %c0_i32 = arith.constant 0 : i32
    %c0_i32_0 = arith.constant 0 : i32
    return %arg0, %c0_i32 : i32, i32
  }
  func.func @transform_1(%arg0: i32) -> (i32, i32) {
    %c0_i32 = arith.constant 0 : i32
    %c0_i32_0 = arith.constant 0 : i32
    %c0_i32_1 = arith.constant 0 : i32
    return %c0_i32, %c0_i32_0 : i32, i32
  }
  func.func @transform_2(%arg0: i32) -> (i32, i32) {
    %c0_i32 = arith.constant 0 : i32
    %c0_i32_0 = arith.constant 0 : i32
    %c0_i32_1 = arith.constant 0 : i32
    return %c0_i32, %c0_i32_0 : i32, i32
  }
  func.func @transform_3(%arg0: i32) -> (i32, i32) {
    %c0_i32 = arith.constant 0 : i32
    %c0_i32_0 = arith.constant 0 : i32
    %c0_i32_1 = arith.constant 0 : i32
    return %c0_i32, %c0_i32_0 : i32, i32
  }
  func.func @transform_4(%arg0: i32) -> (i32, i32) {
    %c0_i32 = arith.constant 0 : i32
    %c0_i32_0 = arith.constant 0 : i32
    %c0_i32_1 = arith.constant 0 : i32
    return %c0_i32, %c0_i32_0 : i32, i32
  }
  func.func @transform_5(%arg0: i32) -> (i32, i32) {
    %c0_i32 = arith.constant 0 : i32
    %c0_i32_0 = arith.constant 0 : i32
    return %arg0, %c0_i32 : i32, i32
  }
}

</mosaic_0001>

<llo_original>
// kernel: vision_forward.1
$region0: #{vision_forward.1}
  #allocation0 [shape = 'u32[]', space=smem, size = 0x4, offset = 0x4, fixed_abs, tag = 'smem constant byte address 0x4 - core index']
  #allocation1 [shape = 'u32[144,128]{1,0:T(1,128)}', space=vmem, size = 0x12000, scoped, tag = 'internal scratch']
  %s0 = inlined_call_operand.vmem [shape: f32[16,1024], index: 0, kind: input, shape index: {}]
  %s1 = inlined_call_operand.vmem [shape: f32[1024,64], index: 1, kind: input, shape index: {}]
  %s2 = inlined_call_operand.vmem [shape: f32[1,64], index: 2, kind: input, shape index: {}]
  %s3 = inlined_call_operand.vmem [shape: f32[64,128], index: 3, kind: input, shape index: {}]
  %s4 = inlined_call_operand.vmem [shape: f32[1,128], index: 4, kind: input, shape index: {}]
  %s5 = inlined_call_operand.hbm [shape: f32[16,128], index: 5, kind: output, shape index: {}]
  %s6 = sld [smem:[#allocation0]]
  $region53: #{vision_forward.1} parent=0
    _
  %s8 = ssub.s32 1, %s6
  %s9 = scalar_select 0, %s8, %s6
  $region1: #{vision_forward.1} parent=0
    #allocation2 [shape = 'u8[8192]{0}', space=vmem, size = 0x2000, scoped, tag = 'output window, operand 0']
    #allocation3 [shape = 's32[2]{0}', space=sflag, size = 0x8, scoped, tag = 'scoped memory for vision_forward.1']
    %10 = vsyncpa [#allocation3], 0
    %s11 = scalar_lea.sflag [#allocation3], 1
    %12 = vsyncpa %s11, 0
    loop: start=0, step=1, limit=4
    $region2: #{vision_forward.1} parent=1 // loop_pre_header
      _
    $region3: #{vision_forward.1} parent=1 // loop_header
      %s14 = sphi 0, %s18
      %p15 = scmp.ge.s32.totalorder %s14, 4
      %s24 = sphi 0, %s26
      %s27 = sphi 0, %s24
      %s28 = sphi 0, %s27
      %s44 = sphi 0, %s28
      %s48 = sphi 0, %s48
      %s50 = sphi 0, %s48
      %s51 = sphi 0, %s50
      %s65 = sphi 0, %s51
      %s69 = sphi 0, %s69
      %s71 = sphi 0, %s69
      %s72 = sphi 0, %s71
      %s86 = sphi 0, %s72
      %s90 = sphi 0, %s90
      %s92 = sphi 0, %s90
      %s93 = sphi 0, %s92
      %s107 = sphi 0, %s93
      %s111 = sphi 0, %s111
      %s113 = sphi 0, %s111
      %s114 = sphi 0, %s113
      %s128 = sphi 0, %s114
      %s134 = sphi 0, %s136
      %s137 = sphi 0, %s134
      %s138 = sphi 0, %s137
      %s154 = sphi 0, %s138
    $region4: #{vision_forward.1} parent=1 // loop_header_branch
      %17 = sbr.rel (%p15) target = $region8
    $region5: #{vision_forward.1} parent=1 // loop_body
      %s19 = ssub.s32 %s14, 1
      %s20 = ssub.s32 %s14, 2
      %s21 = sadd.s32 %s14, 1
      %s22 = ssub.s32 %s14, %s21
      %p23 = scmp.eq.s32.totalorder %s22, 0
      %s25 = sadd.s32 %s24, 1
      %s26 = scalar_select %p23, %s24, %s25
      %p29 = pneg %p23
      %p30 = scmp.eq.s32.totalorder %s14, 1
      %p31 = por %p29, %p30
      %p32 = scmp.ne.s32.totalorder %s24, %s27
      %p33 = scmp.eq.s32.totalorder %s14, 0
      %p34 = por %p32, %p33
      %p35 = scmp.ne.s32.totalorder %s24, %s27
      %p36 = scmp.eq.s32.totalorder %s19, 1
      %p37 = por %p35, %p36
      %p38 = scmp.ne.s32.totalorder %s27, %s28
      %p39 = scmp.eq.s32.totalorder %s19, 0
      %p40 = por %p38, %p39
      %p41 = scmp.ne.s32.totalorder %s27, %s28
      %p42 = scmp.eq.s32.totalorder %s20, 1
      %p43 = por %p41, %p42
      %p45 = scmp.ne.s32.totalorder %s28, %s44
      %p46 = scmp.eq.s32.totalorder %s20, 0
      %p47 = por %p45, %p46
      %s49 = sadd.s32 %s48, 1
      %p52 = scmp.eq.s32.totalorder %s14, 1
      %p53 = scmp.ne.s32.totalorder %s48, %s50
      %p54 = scmp.eq.s32.totalorder %s14, 0
      %p55 = por %p53, %p54
      %p56 = scmp.ne.s32.totalorder %s48, %s50
      %p57 = scmp.eq.s32.totalorder %s19, 1
      %p58 = por %p56, %p57
      %p59 = scmp.ne.s32.totalorder %s50, %s51
      %p60 = scmp.eq.s32.totalorder %s19, 0
      %p61 = por %p59, %p60
      %p62 = scmp.ne.s32.totalorder %s50, %s51
      %p63 = scmp.eq.s32.totalorder %s20, 1
      %p64 = por %p62, %p63
      %p66 = scmp.ne.s32.totalorder %s51, %s65
      %p67 = scmp.eq.s32.totalorder %s20, 0
      %p68 = por %p66, %p67
      %s70 = sadd.s32 %s69, 1
      %p73 = scmp.eq.s32.totalorder %s14, 1
      %p74 = scmp.ne.s32.totalorder %s69, %s71
      %p75 = scmp.eq.s32.totalorder %s14, 0
      %p76 = por %p74, %p75
      %p77 = scmp.ne.s32.totalorder %s69, %s71
      %p78 = scmp.eq.s32.totalorder %s19, 1
      %p79 = por %p77, %p78
      %p80 = scmp.ne.s32.totalorder %s71, %s72
      %p81 = scmp.eq.s32.totalorder %s19, 0
      %p82 = por %p80, %p81
      %p83 = scmp.ne.s32.totalorder %s71, %s72
      %p84 = scmp.eq.s32.totalorder %s20, 1
      %p85 = por %p83, %p84
      %p87 = scmp.ne.s32.totalorder %s72, %s86
      %p88 = scmp.eq.s32.totalorder %s20, 0
      %p89 = por %p87, %p88
      %s91 = sadd.s32 %s90, 1
      %p94 = scmp.eq.s32.totalorder %s14, 1
      %p95 = scmp.ne.s32.totalorder %s90, %s92
      %p96 = scmp.eq.s32.totalorder %s14, 0
      %p97 = por %p95, %p96
      %p98 = scmp.ne.s32.totalorder %s90, %s92
      %p99 = scmp.eq.s32.totalorder %s19, 1
      %p100 = por %p98, %p99
      %p101 = scmp.ne.s32.totalorder %s92, %s93
      %p102 = scmp.eq.s32.totalorder %s19, 0
      %p103 = por %p101, %p102
      %p104 = scmp.ne.s32.totalorder %s92, %s93
      %p105 = scmp.eq.s32.totalorder %s20, 1
      %p106 = por %p104, %p105
      %p108 = scmp.ne.s32.totalorder %s93, %s107
      %p109 = scmp.eq.s32.totalorder %s20, 0
      %p110 = por %p108, %p109
      %s112 = sadd.s32 %s111, 1
      %p115 = scmp.eq.s32.totalorder %s14, 1
      %p116 = scmp.ne.s32.totalorder %s111, %s113
      %p117 = scmp.eq.s32.totalorder %s14, 0
      %p118 = por %p116, %p117
      %p119 = scmp.ne.s32.totalorder %s111, %s113
      %p120 = scmp.eq.s32.totalorder %s19, 1
      %p121 = por %p119, %p120
      %p122 = scmp.ne.s32.totalorder %s113, %s114
      %p123 = scmp.eq.s32.totalorder %s19, 0
      %p124 = por %p122, %p123
      %p125 = scmp.ne.s32.totalorder %s113, %s114
      %p126 = scmp.eq.s32.totalorder %s20, 1
      %p127 = por %p125, %p126
      %p129 = scmp.ne.s32.totalorder %s114, %s128
      %p130 = scmp.eq.s32.totalorder %s20, 0
      %p131 = por %p129, %p130
      %s132 = ssub.s32 %s14, %s21
      %p133 = scmp.eq.s32.totalorder %s132, 0
      %s135 = sadd.s32 %s134, 1
      %s136 = scalar_select %p133, %s134, %s135
      %p139 = pneg %p133
      %p140 = scmp.eq.s32.totalorder %s14, 1
      %p141 = por %p139, %p140
      %p142 = scmp.ne.s32.totalorder %s134, %s137
      %p143 = scmp.eq.s32.totalorder %s14, 0
      %p144 = por %p142, %p143
      %p145 = scmp.ne.s32.totalorder %s134, %s137
      %p146 = scmp.eq.s32.totalorder %s19, 1
      %p147 = por %p145, %p146
      %p148 = scmp.ne.s32.totalorder %s137, %s138
      %p149 = scmp.eq.s32.totalorder %s19, 0
      %p150 = por %p148, %p149
      %p151 = scmp.ne.s32.totalorder %s137, %s138
      %p152 = scmp.eq.s32.totalorder %s20, 1
      %p153 = por %p151, %p152
      %p155 = scmp.ne.s32.totalorder %s138, %s154
      %p156 = scmp.eq.s32.totalorder %s20, 0
      %p157 = por %p155, %p156
      %p158 = scmp.le.s32.totalorder 1, %s14
      %p159 = scmp.lt.s32.totalorder %s14, 3
      %p160 = pnand %p158, %p159
      %p161 = pneg %p160
      // Predicated region
      $region9: #{vision_forward.1} parent=5 // pred_check
        _
      $region10: #{vision_forward.1} parent=5 // pred_check_branch
        %163 = sbr.rel (%p160) target = $region12
      $region11: #{vision_forward.1} parent=5 // pred_region
        %s164 = ssub.s32 %s14, 1
        // Predicated region
        $region13: #{vision_forward.1} parent=11 // pred_check
          %p165 = pneg %p61
        $region14: #{vision_forward.1} parent=11 // pred_check_branch
          %167 = sbr.rel (%p165) target = $region16
        $region15: #{vision_forward.1} parent=11 // pred_region
          _
        $region16: #{vision_forward.1} parent=11 // pred_fallthru
          _
        // Predicated region
        $region17: #{vision_forward.1} parent=11 // pred_check
          %p168 = pneg %p82
        $region18: #{vision_forward.1} parent=11 // pred_check_branch
          %170 = sbr.rel (%p168) target = $region20
        $region19: #{vision_forward.1} parent=11 // pred_region
          _
        $region20: #{vision_forward.1} parent=11 // pred_fallthru
          _
        // Predicated region
        $region21: #{vision_forward.1} parent=11 // pred_check
          %p171 = pneg %p103
        $region22: #{vision_forward.1} parent=11 // pred_check_branch
          %173 = sbr.rel (%p171) target = $region24
        $region23: #{vision_forward.1} parent=11 // pred_region
          _
        $region24: #{vision_forward.1} parent=11 // pred_fallthru
          _
        // Predicated region
        $region25: #{vision_forward.1} parent=11 // pred_check
          %p174 = pneg %p124
        $region26: #{vision_forward.1} parent=11 // pred_check_branch
          %176 = sbr.rel (%p174) target = $region28
        $region27: #{vision_forward.1} parent=11 // pred_region
          _
        $region28: #{vision_forward.1} parent=11 // pred_fallthru
          _
      $region12: #{vision_forward.1} parent=5 // pred_fallthru
        _
      %p177 = scmp.lt.s32.totalorder %s14, 2
      // Predicated region
      $region29: #{vision_forward.1} parent=5 // pred_check
        %p178 = pneg %p177
      $region30: #{vision_forward.1} parent=5 // pred_check_branch
        %180 = sbr.rel (%p178) target = $region32
      $region31: #{vision_forward.1} parent=5 // pred_region
        // Predicated region
        $region33: #{vision_forward.1} parent=31 // pred_check
          %p181 = pneg %p34
        $region34: #{vision_forward.1} parent=31 // pred_check_branch
          %183 = sbr.rel (%p181) target = $region36
        $region35: #{vision_forward.1} parent=31 // pred_region
          %p184 = scmp.lt.s32.totalorder %s14, 1
          %s185 = scalar_select %p184, %s14, 1
          %s186 = smul.addr %s185, 8
          %s187 = smul.addr %s186, 8
          %s188 = scalar_lea.vmem %s0, %s187
        $region36: #{vision_forward.1} parent=31 // pred_fallthru
          _
      $region32: #{vision_forward.1} parent=5 // pred_fallthru
        _
      %p189 = scmp.le.s32.totalorder 1, %s14
      %p190 = scmp.lt.s32.totalorder %s14, 3
      %p191 = pnand %p189, %p190
      %p192 = pneg %p191
      // Predicated region
      $region37: #{vision_forward.1} parent=5 // pred_check
        _
      $region38: #{vision_forward.1} parent=5 // pred_check_branch
        %194 = sbr.rel (%p191) target = $region40
      $region39: #{vision_forward.1} parent=5 // pred_region
        %s195 = ssub.s32 %s14, 1
        %p196 = scmp.lt.s32.totalorder %s19, 1
        %s197 = scalar_select %p196, %s19, 1
        %s198 = smul.addr %s197, 8
        %s199 = smul.addr %s198, 8
        %s200 = scalar_lea.vmem %s0, %s199
        %p201 = pneg %p40
        %p202 = pneg %p37
        %p203 = pneg %p61
        %p204 = pneg %p58
        %p205 = pneg %p82
        %p206 = pneg %p79
        %p207 = pneg %p103
        %p208 = pneg %p100
        %p209 = pneg %p124
        %p210 = pneg %p121
        %p211 = pneg %p150
        %p212 = pneg %p147
        %s213 = sand.u32 %s137, 1
        %s214 = scalar_lea.sflag [#allocation3], %s213
        %s215 = sand.u32 %s137, 1
        %s216 = smul.addr %s215, 8
        %s217 = scalar_lea.vmem [#allocation2], %s216
        %p218 = scmp.lt.s32.totalorder %s19, 1
        %s219 = scalar_select %p218, %s19, 1
        %s220 = smul.addr %s219, 8
        %s221 = smul.addr %s220, 8
        %s222 = scalar_lea.vmem %s0, %s221
        %v223 = vld [vmem:[%s222] sm:$0xff]
        %v224 = vld [vmem:[%s222 + $0x8] sm:$0xff]
        %v225 = vld [vmem:[%s222 + $0x10] sm:$0xff]
        %v226 = vld [vmem:[%s222 + $0x18] sm:$0xff]
        %v227 = vld [vmem:[%s222 + $0x20] sm:$0xff]
        %v228 = vld [vmem:[%s222 + $0x28] sm:$0xff]
        %v229 = vld [vmem:[%s222 + $0x30] sm:$0xff]
        %v230 = vld [vmem:[%s222 + $0x38] sm:$0xff]
        %v231 = vld [vmem:[%s1] sm:$0xff]
        %v232 = vld [vmem:[%s1 + $0x8] sm:$0xff]
        %v233 = vld [vmem:[%s1 + $0x10] sm:$0xff]
        %v234 = vld [vmem:[%s1 + $0x18] sm:$0xff]
        %v235 = vld [vmem:[%s1 + $0x20] sm:$0xff]
        %v236 = vld [vmem:[%s1 + $0x28] sm:$0xff]
        %v237 = vld [vmem:[%s1 + $0x30] sm:$0xff]
        %v238 = vld [vmem:[%s1 + $0x38] sm:$0xff]
        %v239 = vld [vmem:[%s1 + $0x40] sm:$0xff]
        %v240 = vld [vmem:[%s1 + $0x48] sm:$0xff]
        %v241 = vld [vmem:[%s1 + $0x50] sm:$0xff]
        %v242 = vld [vmem:[%s1 + $0x58] sm:$0xff]
        %v243 = vld [vmem:[%s1 + $0x60] sm:$0xff]
        %v244 = vld [vmem:[%s1 + $0x68] sm:$0xff]
        %v245 = vld [vmem:[%s1 + $0x70] sm:$0xff]
        %v246 = vld [vmem:[%s1 + $0x78] sm:$0xff]
        %v247 = vld [vmem:[%s1 + $0x80] sm:$0xff]
        %v248 = vld [vmem:[%s1 + $0x88] sm:$0xff]
        %v249 = vld [vmem:[%s1 + $0x90] sm:$0xff]
        %v250 = vld [vmem:[%s1 + $0x98] sm:$0xff]
        %v251 = vld [vmem:[%s1 + $0xa0] sm:$0xff]
        %v252 = vld [vmem:[%s1 + $0xa8] sm:$0xff]
        %v253 = vld [vmem:[%s1 + $0xb0] sm:$0xff]
        %v254 = vld [vmem:[%s1 + $0xb8] sm:$0xff]
        %v255 = vld [vmem:[%s1 + $0xc0] sm:$0xff]
        %v256 = vld [vmem:[%s1 + $0xc8] sm:$0xff]
        %v257 = vld [vmem:[%s1 + $0xd0] sm:$0xff]
        %v258 = vld [vmem:[%s1 + $0xd8] sm:$0xff]
        %v259 = vld [vmem:[%s1 + $0xe0] sm:$0xff]
        %v260 = vld [vmem:[%s1 + $0xe8] sm:$0xff]
        %v261 = vld [vmem:[%s1 + $0xf0] sm:$0xff]
        %v262 = vld [vmem:[%s1 + $0xf8] sm:$0xff]
        %v263 = vld [vmem:[%s1 + $0x100] sm:$0xff]
        %v264 = vld [vmem:[%s1 + $0x108] sm:$0xff]
        %v265 = vld [vmem:[%s1 + $0x110] sm:$0xff]
        %v266 = vld [vmem:[%s1 + $0x118] sm:$0xff]
        %v267 = vld [vmem:[%s1 + $0x120] sm:$0xff]
        %v268 = vld [vmem:[%s1 + $0x128] sm:$0xff]
        %v269 = vld [vmem:[%s1 + $0x130] sm:$0xff]
        %v270 = vld [vmem:[%s1 + $0x138] sm:$0xff]
        %v271 = vld [vmem:[%s1 + $0x140] sm:$0xff]
        %v272 = vld [vmem:[%s1 + $0x148] sm:$0xff]
        %v273 = vld [vmem:[%s1 + $0x150] sm:$0xff]
        %v274 = vld [vmem:[%s1 + $0x158] sm:$0xff]
        %v275 = vld [vmem:[%s1 + $0x160] sm:$0xff]
        %v276 = vld [vmem:[%s1 + $0x168] sm:$0xff]
        %v277 = vld [vmem:[%s1 + $0x170] sm:$0xff]
        %v278 = vld [vmem:[%s1 + $0x178] sm:$0xff]
        %v279 = vld [vmem:[%s1 + $0x180] sm:$0xff]
        %v280 = vld [vmem:[%s1 + $0x188] sm:$0xff]
        %v281 = vld [vmem:[%s1 + $0x190] sm:$0xff]
        %v282 = vld [vmem:[%s1 + $0x198] sm:$0xff]
        %v283 = vld [vmem:[%s1 + $0x1a0] sm:$0xff]
        %v284 = vld [vmem:[%s1 + $0x1a8] sm:$0xff]
        %v285 = vld [vmem:[%s1 + $0x1b0] sm:$0xff]
        %v286 = vld [vmem:[%s1 + $0x1b8] sm:$0xff]
        %v287 = vld [vmem:[%s1 + $0x1c0] sm:$0xff]
        %v288 = vld [vmem:[%s1 + $0x1c8] sm:$0xff]
        %v289 = vld [vmem:[%s1 + $0x1d0] sm:$0xff]
        %v290 = vld [vmem:[%s1 + $0x1d8] sm:$0xff]
        %v291 = vld [vmem:[%s1 + $0x1e0] sm:$0xff]
        %v292 = vld [vmem:[%s1 + $0x1e8] sm:$0xff]
        %v293 = vld [vmem:[%s1 + $0x1f0] sm:$0xff]
        %v294 = vld [vmem:[%s1 + $0x1f8] sm:$0xff]
        %v295 = vld [vmem:[%s1 + $0x200] sm:$0xff]
        %v296 = vld [vmem:[%s1 + $0x208] sm:$0xff]
        %v297 = vld [vmem:[%s1 + $0x210] sm:$0xff]
        %v298 = vld [vmem:[%s1 + $0x218] sm:$0xff]
        %v299 = vld [vmem:[%s1 + $0x220] sm:$0xff]
        %v300 = vld [vmem:[%s1 + $0x228] sm:$0xff]
        %v301 = vld [vmem:[%s1 + $0x230] sm:$0xff]
        %v302 = vld [vmem:[%s1 + $0x238] sm:$0xff]
        %v303 = vld [vmem:[%s1 + $0x240] sm:$0xff]
        %v304 = vld [vmem:[%s1 + $0x248] sm:$0xff]
        %v305 = vld [vmem:[%s1 + $0x250] sm:$0xff]
        %v306 = vld [vmem:[%s1 + $0x258] sm:$0xff]
        %v307 = vld [vmem:[%s1 + $0x260] sm:$0xff]
        %v308 = vld [vmem:[%s1 + $0x268] sm:$0xff]
        %v309 = vld [vmem:[%s1 + $0x270] sm:$0xff]
        %v310 = vld [vmem:[%s1 + $0x278] sm:$0xff]
        %v311 = vld [vmem:[%s1 + $0x280] sm:$0xff]
        %v312 = vld [vmem:[%s1 + $0x288] sm:$0xff]
        %v313 = vld [vmem:[%s1 + $0x290] sm:$0xff]
        %v314 = vld [vmem:[%s1 + $0x298] sm:$0xff]
        %v315 = vld [vmem:[%s1 + $0x2a0] sm:$0xff]
        %v316 = vld [vmem:[%s1 + $0x2a8] sm:$0xff]
        %v317 = vld [vmem:[%s1 + $0x2b0] sm:$0xff]
        %v318 = vld [vmem:[%s1 + $0x2b8] sm:$0xff]
        %v319 = vld [vmem:[%s1 + $0x2c0] sm:$0xff]
        %v320 = vld [vmem:[%s1 + $0x2c8] sm:$0xff]
        %v321 = vld [vmem:[%s1 + $0x2d0] sm:$0xff]
        %v322 = vld [vmem:[%s1 + $0x2d8] sm:$0xff]
        %v323 = vld [vmem:[%s1 + $0x2e0] sm:$0xff]
        %v324 = vld [vmem:[%s1 + $0x2e8] sm:$0xff]
        %v325 = vld [vmem:[%s1 + $0x2f0] sm:$0xff]
        %v326 = vld [vmem:[%s1 + $0x2f8] sm:$0xff]
        %v327 = vld [vmem:[%s1 + $0x300] sm:$0xff]
        %v328 = vld [vmem:[%s1 + $0x308] sm:$0xff]
        %v329 = vld [vmem:[%s1 + $0x310] sm:$0xff]
        %v330 = vld [vmem:[%s1 + $0x318] sm:$0xff]
        %v331 = vld [vmem:[%s1 + $0x320] sm:$0xff]
        %v332 = vld [vmem:[%s1 + $0x328] sm:$0xff]
        %v333 = vld [vmem:[%s1 + $0x330] sm:$0xff]
        %v334 = vld [vmem:[%s1 + $0x338] sm:$0xff]
        %v335 = vld [vmem:[%s1 + $0x340] sm:$0xff]
        %v336 = vld [vmem:[%s1 + $0x348] sm:$0xff]
        %v337 = vld [vmem:[%s1 + $0x350] sm:$0xff]
        %v338 = vld [vmem:[%s1 + $0x358] sm:$0xff]
        %v339 = vld [vmem:[%s1 + $0x360] sm:$0xff]
        %v340 = vld [vmem:[%s1 + $0x368] sm:$0xff]
        %v341 = vld [vmem:[%s1 + $0x370] sm:$0xff]
        %v342 = vld [vmem:[%s1 + $0x378] sm:$0xff]
        %v343 = vld [vmem:[%s1 + $0x380] sm:$0xff]
        %v344 = vld [vmem:[%s1 + $0x388] sm:$0xff]
        %v345 = vld [vmem:[%s1 + $0x390] sm:$0xff]
        %v346 = vld [vmem:[%s1 + $0x398] sm:$0xff]
        %v347 = vld [vmem:[%s1 + $0x3a0] sm:$0xff]
        %v348 = vld [vmem:[%s1 + $0x3a8] sm:$0xff]
        %v349 = vld [vmem:[%s1 + $0x3b0] sm:$0xff]
        %v350 = vld [vmem:[%s1 + $0x3b8] sm:$0xff]
        %v351 = vld [vmem:[%s1 + $0x3c0] sm:$0xff]
        %v352 = vld [vmem:[%s1 + $0x3c8] sm:$0xff]
        %v353 = vld [vmem:[%s1 + $0x3d0] sm:$0xff]
        %v354 = vld [vmem:[%s1 + $0x3d8] sm:$0xff]
        %v355 = vld [vmem:[%s1 + $0x3e0] sm:$0xff]
        %v356 = vld [vmem:[%s1 + $0x3e8] sm:$0xff]
        %v357 = vld [vmem:[%s1 + $0x3f0] sm:$0xff]
        %v358 = vld [vmem:[%s1 + $0x3f8] sm:$0xff]
        %v359 = vld [vmem:[%s2] sm:$0x1]
        %v361 = vlaneseq
        %v362 = vshrl.u32 %v361, 7
        %v363 = vsub.s32 0, %v362
        %v364 = vrot.slane %v359, %v363
        %366 = vmatprep.subr.mxu0 0.0
        %367 = vmatpush1.msra.mxu0 %v231
        %368 = vmatprep.subr.mxu0 0.0
        %369 = vmatpush1.msra.mxu0 %v232
        %370 = vmatprep.subr.mxu0 0.0
        %371 = vmatpush1.msra.mxu0 %v233
        %372 = vmatprep.subr.mxu0 0.0
        %373 = vmatpush1.msra.mxu0 %v234
        %374 = vmatprep.subr.mxu0 0.0
        %375 = vmatpush1.msra.mxu0 %v235
        %376 = vmatprep.subr.mxu0 0.0
        %377 = vmatpush1.msra.mxu0 %v236
        %378 = vmatprep.subr.mxu0 0.0
        %379 = vmatpush1.msra.mxu0 %v237
        %380 = vmatprep.subr.mxu0 0.0
        %381 = vmatpush1.msra.mxu0 %v238
        %382 = vmatprep.subr.mxu0 0.0
        %383 = vmatpush1.msra.mxu0 %v239
        %384 = vmatprep.subr.mxu0 0.0
        %385 = vmatpush1.msra.mxu0 %v240
        %386 = vmatprep.subr.mxu0 0.0
        %387 = vmatpush1.msra.mxu0 %v241
        %388 = vmatprep.subr.mxu0 0.0
        %389 = vmatpush1.msra.mxu0 %v242
        %390 = vmatprep.subr.mxu0 0.0
        %391 = vmatpush1.msra.mxu0 %v243
        %392 = vmatprep.subr.mxu0 0.0
        %393 = vmatpush1.msra.mxu0 %v244
        %394 = vmatprep.subr.mxu0 0.0
        %395 = vmatpush1.msra.mxu0 %v245
        %396 = vmatprep.subr.mxu0 0.0
        %397 = vmatpush1.msra.mxu0 %v246
        %398 = vmatprep.subr.mxu0 0.0
        %399 = vmatpush1.msra.mxu0 %v247
        %400 = vmatprep.subr.mxu0 0.0
        %401 = vmatpush1.msra.mxu0 %v248
        %402 = vmatprep.subr.mxu0 0.0
        %403 = vmatpush1.msra.mxu0 %v249
        %404 = vmatprep.subr.mxu0 0.0
        %405 = vmatpush1.msra.mxu0 %v250
        %406 = vmatprep.subr.mxu0 0.0
        %407 = vmatpush1.msra.mxu0 %v251
        %408 = vmatprep.subr.mxu0 0.0
        %409 = vmatpush1.msra.mxu0 %v252
        %410 = vmatprep.subr.mxu0 0.0
        %411 = vmatpush1.msra.mxu0 %v253
        %412 = vmatprep.subr.mxu0 0.0
        %413 = vmatpush1.msra.mxu0 %v254
        %414 = vmatprep.subr.mxu0 0.0
        %415 = vmatpush1.msra.mxu0 %v255
        %416 = vmatprep.subr.mxu0 0.0
        %417 = vmatpush1.msra.mxu0 %v256
        %418 = vmatprep.subr.mxu0 0.0
        %419 = vmatpush1.msra.mxu0 %v257
        %420 = vmatprep.subr.mxu0 0.0
        %421 = vmatpush1.msra.mxu0 %v258
        %422 = vmatprep.subr.mxu0 0.0
        %423 = vmatpush1.msra.mxu0 %v259
        %424 = vmatprep.subr.mxu0 0.0
        %425 = vmatpush1.msra.mxu0 %v260
        %426 = vmatprep.subr.mxu0 0.0
        %427 = vmatpush1.msra.mxu0 %v261
        %428 = vmatprep.subr.mxu0 0.0
        %429 = vmatpush1.msra.mxu0 %v262
        %430 = vmatprep.mubr.f32.mxu0 %v224
        %431 = vmatmul.mubr.f32.gmra.mrb[0].mxu0 %v223
        %v432 = vpop.f32.mrb[0].mxu0
        %v433 = vadd.f32 %v364, %v432
        %v434 = vpop.f32.mrb[0].mxu0
        %435 = vdwg.mxu0
        %436 = vmatprep.subr.mxu0 0.0
        %437 = vmatpush1.msra.mxu0 %v263
        %438 = vmatprep.subr.mxu0 0.0
        %439 = vmatpush1.msra.mxu0 %v264
        %440 = vmatprep.subr.mxu0 0.0
        %441 = vmatpush1.msra.mxu0 %v265
        %442 = vmatprep.subr.mxu0 0.0
        %443 = vmatpush1.msra.mxu0 %v266
        %444 = vmatprep.subr.mxu0 0.0
        %445 = vmatpush1.msra.mxu0 %v267
        %446 = vmatprep.subr.mxu0 0.0
        %447 = vmatpush1.msra.mxu0 %v268
        %448 = vmatprep.subr.mxu0 0.0
        %449 = vmatpush1.msra.mxu0 %v269
        %450 = vmatprep.subr.mxu0 0.0
        %451 = vmatpush1.msra.mxu0 %v270
        %452 = vmatprep.subr.mxu0 0.0
        %453 = vmatpush1.msra.mxu0 %v271
        %454 = vmatprep.subr.mxu0 0.0
        %455 = vmatpush1.msra.mxu0 %v272
        %456 = vmatprep.subr.mxu0 0.0
        %457 = vmatpush1.msra.mxu0 %v273
        %458 = vmatprep.subr.mxu0 0.0
        %459 = vmatpush1.msra.mxu0 %v274
        %460 = vmatprep.subr.mxu0 0.0
        %461 = vmatpush1.msra.mxu0 %v275
        %462 = vmatprep.subr.mxu0 0.0
        %463 = vmatpush1.msra.mxu0 %v276
        %464 = vmatprep.subr.mxu0 0.0
        %465 = vmatpush1.msra.mxu0 %v277
        %466 = vmatprep.subr.mxu0 0.0
        %467 = vmatpush1.msra.mxu0 %v278
        %468 = vmatprep.subr.mxu0 0.0
        %469 = vmatpush1.msra.mxu0 %v279
        %470 = vmatprep.subr.mxu0 0.0
        %471 = vmatpush1.msra.mxu0 %v280
        %472 = vmatprep.subr.mxu0 0.0
        %473 = vmatpush1.msra.mxu0 %v281
        %474 = vmatprep.subr.mxu0 0.0
        %475 = vmatpush1.msra.mxu0 %v282
        %476 = vmatprep.subr.mxu0 0.0
        %477 = vmatpush1.msra.mxu0 %v283
        %478 = vmatprep.subr.mxu0 0.0
        %479 = vmatpush1.msra.mxu0 %v284
        %480 = vmatprep.subr.mxu0 0.0
        %481 = vmatpush1.msra.mxu0 %v285
        %482 = vmatprep.subr.mxu0 0.0
        %483 = vmatpush1.msra.mxu0 %v286
        %484 = vmatprep.subr.mxu0 0.0
        %485 = vmatpush1.msra.mxu0 %v287
        %486 = vmatprep.subr.mxu0 0.0
        %487 = vmatpush1.msra.mxu0 %v288
        %488 = vmatprep.subr.mxu0 0.0
        %489 = vmatpush1.msra.mxu0 %v289
        %490 = vmatprep.subr.mxu0 0.0
        %491 = vmatpush1.msra.mxu0 %v290
        %492 = vmatprep.subr.mxu0 0.0
        %493 = vmatpush1.msra.mxu0 %v291
        %494 = vmatprep.subr.mxu0 0.0
        %495 = vmatpush1.msra.mxu0 %v292
        %496 = vmatprep.subr.mxu0 0.0
        %497 = vmatpush1.msra.mxu0 %v293
        %498 = vmatprep.subr.mxu0 0.0
        %499 = vmatpush1.msra.mxu0 %v294
        %500 = vmatprep.mubr.f32.mxu0 %v226
        %501 = vmatmul.mubr.f32.gmra.mrb[0].mxu0 %v225
        %v502 = vpop.f32.mrb[0].mxu0
        %v503 = vadd.f32 %v433, %v502
        %v504 = vpop.f32.mrb[0].mxu0
        %505 = vdwg.mxu0
        %506 = vmatprep.subr.mxu0 0.0
        %507 = vmatpush1.msra.mxu0 %v295
        %508 = vmatprep.subr.mxu0 0.0
        %509 = vmatpush1.msra.mxu0 %v296
        %510 = vmatprep.subr.mxu0 0.0
        %511 = vmatpush1.msra.mxu0 %v297
        %512 = vmatprep.subr.mxu0 0.0
        %513 = vmatpush1.msra.mxu0 %v298
        %514 = vmatprep.subr.mxu0 0.0
        %515 = vmatpush1.msra.mxu0 %v299
        %516 = vmatprep.subr.mxu0 0.0
        %517 = vmatpush1.msra.mxu0 %v300
        %518 = vmatprep.subr.mxu0 0.0
        %519 = vmatpush1.msra.mxu0 %v301
        %520 = vmatprep.subr.mxu0 0.0
        %521 = vmatpush1.msra.mxu0 %v302
        %522 = vmatprep.subr.mxu0 0.0
        %523 = vmatpush1.msra.mxu0 %v303
        %524 = vmatprep.subr.mxu0 0.0
        %525 = vmatpush1.msra.mxu0 %v304
        %526 = vmatprep.subr.mxu0 0.0
        %527 = vmatpush1.msra.mxu0 %v305
        %528 = vmatprep.subr.mxu0 0.0
        %529 = vmatpush1.msra.mxu0 %v306
        %530 = vmatprep.subr.mxu0 0.0
        %531 = vmatpush1.msra.mxu0 %v307
        %532 = vmatprep.subr.mxu0 0.0
        %533 = vmatpush1.msra.mxu0 %v308
        %534 = vmatprep.subr.mxu0 0.0
        %535 = vmatpush1.msra.mxu0 %v309
        %536 = vmatprep.subr.mxu0 0.0
        %537 = vmatpush1.msra.mxu0 %v310
        %538 = vmatprep.subr.mxu0 0.0
        %539 = vmatpush1.msra.mxu0 %v311
        %540 = vmatprep.subr.mxu0 0.0
        %541 = vmatpush1.msra.mxu0 %v312
        %542 = vmatprep.subr.mxu0 0.0
        %543 = vmatpush1.msra.mxu0 %v313
        %544 = vmatprep.subr.mxu0 0.0
        %545 = vmatpush1.msra.mxu0 %v314
        %546 = vmatprep.subr.mxu0 0.0
        %547 = vmatpush1.msra.mxu0 %v315
        %548 = vmatprep.subr.mxu0 0.0
        %549 = vmatpush1.msra.mxu0 %v316
        %550 = vmatprep.subr.mxu0 0.0
        %551 = vmatpush1.msra.mxu0 %v317
        %552 = vmatprep.subr.mxu0 0.0
        %553 = vmatpush1.msra.mxu0 %v318
        %554 = vmatprep.subr.mxu0 0.0
        %555 = vmatpush1.msra.mxu0 %v319
        %556 = vmatprep.subr.mxu0 0.0
        %557 = vmatpush1.msra.mxu0 %v320
        %558 = vmatprep.subr.mxu0 0.0
        %559 = vmatpush1.msra.mxu0 %v321
        %560 = vmatprep.subr.mxu0 0.0
        %561 = vmatpush1.msra.mxu0 %v322
        %562 = vmatprep.subr.mxu0 0.0
        %563 = vmatpush1.msra.mxu0 %v323
        %564 = vmatprep.subr.mxu0 0.0
        %565 = vmatpush1.msra.mxu0 %v324
        %566 = vmatprep.subr.mxu0 0.0
        %567 = vmatpush1.msra.mxu0 %v325
        %568 = vmatprep.subr.mxu0 0.0
        %569 = vmatpush1.msra.mxu0 %v326
        %570 = vmatprep.mubr.f32.mxu0 %v228
        %571 = vmatmul.mubr.f32.gmra.mrb[0].mxu0 %v227
        %v572 = vpop.f32.mrb[0].mxu0
        %v573 = vadd.f32 %v503, %v572
        %v574 = vpop.f32.mrb[0].mxu0
        %575 = vdwg.mxu0
        %576 = vmatprep.subr.mxu0 0.0
        %577 = vmatpush1.msra.mxu0 %v327
        %578 = vmatprep.subr.mxu0 0.0
        %579 = vmatpush1.msra.mxu0 %v328
        %580 = vmatprep.subr.mxu0 0.0
        %581 = vmatpush1.msra.mxu0 %v329
        %582 = vmatprep.subr.mxu0 0.0
        %583 = vmatpush1.msra.mxu0 %v330
        %584 = vmatprep.subr.mxu0 0.0
        %585 = vmatpush1.msra.mxu0 %v331
        %586 = vmatprep.subr.mxu0 0.0
        %587 = vmatpush1.msra.mxu0 %v332
        %588 = vmatprep.subr.mxu0 0.0
        %589 = vmatpush1.msra.mxu0 %v333
        %590 = vmatprep.subr.mxu0 0.0
        %591 = vmatpush1.msra.mxu0 %v334
        %592 = vmatprep.subr.mxu0 0.0
        %593 = vmatpush1.msra.mxu0 %v335
        %594 = vmatprep.subr.mxu0 0.0
        %595 = vmatpush1.msra.mxu0 %v336
        %596 = vmatprep.subr.mxu0 0.0
        %597 = vmatpush1.msra.mxu0 %v337
        %598 = vmatprep.subr.mxu0 0.0
        %599 = vmatpush1.msra.mxu0 %v338
        %600 = vmatprep.subr.mxu0 0.0
        %601 = vmatpush1.msra.mxu0 %v339
        %602 = vmatprep.subr.mxu0 0.0
        %603 = vmatpush1.msra.mxu0 %v340
        %604 = vmatprep.subr.mxu0 0.0
        %605 = vmatpush1.msra.mxu0 %v341
        %606 = vmatprep.subr.mxu0 0.0
        %607 = vmatpush1.msra.mxu0 %v342
        %608 = vmatprep.subr.mxu0 0.0
        %609 = vmatpush1.msra.mxu0 %v343
        %610 = vmatprep.subr.mxu0 0.0
        %611 = vmatpush1.msra.mxu0 %v344
        %612 = vmatprep.subr.mxu0 0.0
        %613 = vmatpush1.msra.mxu0 %v345
        %614 = vmatprep.subr.mxu0 0.0
        %615 = vmatpush1.msra.mxu0 %v346
        %616 = vmatprep.subr.mxu0 0.0
        %617 = vmatpush1.msra.mxu0 %v347
        %618 = vmatprep.subr.mxu0 0.0
        %619 = vmatpush1.msra.mxu0 %v348
        %620 = vmatprep.subr.mxu0 0.0
        %621 = vmatpush1.msra.mxu0 %v349
        %622 = vmatprep.subr.mxu0 0.0
        %623 = vmatpush1.msra.mxu0 %v350
        %624 = vmatprep.subr.mxu0 0.0
        %625 = vmatpush1.msra.mxu0 %v351
        %626 = vmatprep.subr.mxu0 0.0
        %627 = vmatpush1.msra.mxu0 %v352
        %628 = vmatprep.subr.mxu0 0.0
        %629 = vmatpush1.msra.mxu0 %v353
        %630 = vmatprep.subr.mxu0 0.0
        %631 = vmatpush1.msra.mxu0 %v354
        %632 = vmatprep.subr.mxu0 0.0
        %633 = vmatpush1.msra.mxu0 %v355
        %634 = vmatprep.subr.mxu0 0.0
        %635 = vmatpush1.msra.mxu0 %v356
        %636 = vmatprep.subr.mxu0 0.0
        %637 = vmatpush1.msra.mxu0 %v357
        %638 = vmatprep.subr.mxu0 0.0
        %639 = vmatpush1.msra.mxu0 %v358
        %640 = vmatprep.mubr.f32.mxu0 %v230
        %641 = vmatmul.mubr.f32.gmra.mrb[0].mxu0 %v229
        %v642 = vpop.f32.mrb[0].mxu0
        %v643 = vadd.f32 %v573, %v642
        %v644 = vpop.f32.mrb[0].mxu0
        %645 = vdwg.mxu0
        %v646 = vtanh.pop %v643
        %v647 = vld [vmem:[%s3] sm:$0xff]
        %v648 = vld [vmem:[%s3 + $0x8] sm:$0xff]
        %v649 = vld [vmem:[%s3 + $0x10] sm:$0xff]
        %v650 = vld [vmem:[%s3 + $0x18] sm:$0xff]
        %v651 = vld [vmem:[%s3 + $0x20] sm:$0xff]
        %v652 = vld [vmem:[%s3 + $0x28] sm:$0xff]
        %v653 = vld [vmem:[%s3 + $0x30] sm:$0xff]
        %v654 = vld [vmem:[%s3 + $0x38] sm:$0xff]
        %v655 = vld [vmem:[%s4] sm:$0x1]
        %v657 = vlaneseq
        %v658 = vshrl.u32 %v657, 7
        %v659 = vsub.s32 0, %v658
        %v660 = vrot.slane %v655, %v659
        %vm662 = vcmask 523264
        %v664 = vsel %vm662, %v646, 0
        %666 = vmatprep.subr.mxu0 0.0
        %667 = vmatpush1.msra.mxu0 %v647
        %668 = vmatprep.subr.mxu0 0.0
        %669 = vmatpush1.msra.mxu0 %v648
        %670 = vmatprep.subr.mxu0 0.0
        %671 = vmatpush1.msra.mxu0 %v649
        %672 = vmatprep.subr.mxu0 0.0
        %673 = vmatpush1.msra.mxu0 %v650
        %674 = vmatprep.subr.mxu0 0.0
        %675 = vmatpush1.msra.mxu0 %v651
        %676 = vmatprep.subr.mxu0 0.0
        %677 = vmatpush1.msra.mxu0 %v652
        %678 = vmatprep.subr.mxu0 0.0
        %679 = vmatpush1.msra.mxu0 %v653
        %680 = vmatprep.subr.mxu0 0.0
        %681 = vmatpush1.msra.mxu0 %v654
        %682 = vmatprep.subr.mxu0 0.0
        %683 = vmatpush1.msra.mxu0 0.0
        %684 = vmatprep.subr.mxu0 0.0
        %685 = vmatpush1.msra.mxu0 0.0
        %686 = vmatprep.subr.mxu0 0.0
        %687 = vmatpush1.msra.mxu0 0.0
        %688 = vmatprep.subr.mxu0 0.0
        %689 = vmatpush1.msra.mxu0 0.0
        %690 = vmatprep.subr.mxu0 0.0
        %691 = vmatpush1.msra.mxu0 0.0
        %692 = vmatprep.subr.mxu0 0.0
        %693 = vmatpush1.msra.mxu0 0.0
        %694 = vmatprep.subr.mxu0 0.0
        %695 = vmatpush1.msra.mxu0 0.0
        %696 = vmatprep.subr.mxu0 0.0
        %697 = vmatpush1.msra.mxu0 0.0
        %698 = vmatprep.subr.mxu0 0.0
        %699 = vmatpush1.msra.mxu0 0.0
        %700 = vmatprep.subr.mxu0 0.0
        %701 = vmatpush1.msra.mxu0 0.0
        %702 = vmatprep.subr.mxu0 0.0
        %703 = vmatpush1.msra.mxu0 0.0
        %704 = vmatprep.subr.mxu0 0.0
        %705 = vmatpush1.msra.mxu0 0.0
        %706 = vmatprep.subr.mxu0 0.0
        %707 = vmatpush1.msra.mxu0 0.0
        %708 = vmatprep.subr.mxu0 0.0
        %709 = vmatpush1.msra.mxu0 0.0
        %710 = vmatprep.subr.mxu0 0.0
        %711 = vmatpush1.msra.mxu0 0.0
        %712 = vmatprep.subr.mxu0 0.0
        %713 = vmatpush1.msra.mxu0 0.0
        %714 = vmatprep.subr.mxu0 0.0
        %715 = vmatpush1.msra.mxu0 0.0
        %716 = vmatprep.subr.mxu0 0.0
        %717 = vmatpush1.msra.mxu0 0.0
        %718 = vmatprep.subr.mxu0 0.0
        %719 = vmatpush1.msra.mxu0 0.0
        %720 = vmatprep.subr.mxu0 0.0
        %721 = vmatpush1.msra.mxu0 0.0
        %722 = vmatprep.subr.mxu0 0.0
        %723 = vmatpush1.msra.mxu0 0.0
        %724 = vmatprep.subr.mxu0 0.0
        %725 = vmatpush1.msra.mxu0 0.0
        %726 = vmatprep.subr.mxu0 0.0
        %727 = vmatpush1.msra.mxu0 0.0
        %728 = vmatprep.subr.mxu0 0.0
        %729 = vmatpush1.msra.mxu0 0.0
        %730 = vmatprep.mubr.f32.mxu0 0.0
        %731 = vmatmul.mubr.f32.gmra.mrb[0].mxu0 %v664
        %v732 = vpop.f32.mrb[0].mxu0
        %v733 = vadd.f32 %v660, %v732
        %v734 = vpop.f32.mrb[0].mxu0
        %735 = vdwg.mxu0
        %736 = vst [vmem:[%s217] sm:$0xff] %v733
        %s737 = sand.u32 %s137, 1
        %s738 = scalar_lea.sflag [#allocation3], %s737
        %s739 = sand.u32 %s137, 1
        %s740 = smul.addr %s739, 8
        %s741 = scalar_lea.vmem [#allocation2], %s740
        // Predicated region
        $region41: #{vision_forward.1} parent=39 // pred_check
          %p742 = pneg %p147
        $region42: #{vision_forward.1} parent=39 // pred_check_branch
          %744 = sbr.rel (%p742) target = $region44
        $region43: #{vision_forward.1} parent=39 // pred_region
          %s746 = ssub.s32 128, 128
          %747 = vsyncadd %s738, %s746
          %s748 = smul.addr %s19, 128
          %s749 = scalar_lea.hbm %s5, %s748
          %s751 = sshll.u32 %s741, 4
          %s752 = int_to_ptr.vmem [resolvable:$true] %s751
          %754 = dma.vmem_to_hbm [thread:$0]  %s752, 128, %s749, %s738
        $region44: #{vision_forward.1} parent=39 // pred_fallthru
          _
      $region40: #{vision_forward.1} parent=5 // pred_fallthru
        _
      %p755 = scmp.le.s32.totalorder 2, %s14
      // Predicated region
      $region45: #{vision_forward.1} parent=5 // pred_check
        %p756 = pneg %p755
      $region46: #{vision_forward.1} parent=5 // pred_check_branch
        %758 = sbr.rel (%p756) target = $region48
      $region47: #{vision_forward.1} parent=5 // pred_region
        %s759 = ssub.s32 %s14, 2
        // Predicated region
        $region49: #{vision_forward.1} parent=47 // pred_check
          %p760 = pneg %p153
        $region50: #{vision_forward.1} parent=47 // pred_check_branch
          %762 = sbr.rel (%p760) target = $region52
        $region51: #{vision_forward.1} parent=47 // pred_region
          %s763 = sand.u32 %s138, 1
          %s764 = scalar_lea.sflag [#allocation3], %s763
          %s765 = sand.u32 %s138, 1
          %s766 = smul.addr %s765, 8
          %s767 = scalar_lea.vmem [#allocation2], %s766
          %768 = dma.done %s764, 128
        $region52: #{vision_forward.1} parent=47 // pred_fallthru
          _
      $region48: #{vision_forward.1} parent=5 // pred_fallthru
        _
    $region6: #{vision_forward.1} parent=1 // loop_footer
      %s18 = sadd.s32 1, %s14
    $region7: #{vision_forward.1} parent=1 // loop_footer_branch
      %13 = sbr.rel target = $region3
    $region8: #{vision_forward.1} parent=1 // loop_exit
      _
    %769 = vsyncpa [#allocation3], 1
    %s770 = scalar_lea.sflag [#allocation3], 1
    %771 = vsyncpa %s770, 1

</llo_original>
